<compile_context>
chip_gen: v7x
topology: tpu7x:2x2x1
jax: 0.10.0
libtpu: 0.0.40
codegen_flags: <defaults>
</compile_context>

<pallas_src>
import functools

import jax
import jax.numpy as jnp
from jax import lax
from jax.experimental import pallas as pl
from jax.experimental.pallas import tpu as pltpu


# --------------------------------------------------------------------------
# Hardware-aware sizing helpers
# --------------------------------------------------------------------------
def _vmem_caps():
    """Return (usable_vmem_bytes, streamed_tile_target_bytes, multi_core_hint)."""
    vmem_total = 128 << 20
    try:
        info = pltpu.get_tpu_info()
        vmem_total = int(getattr(info, "vmem_capacity_bytes", vmem_total))
    except Exception:
        pass
    if vmem_total <= (72 << 20):
        # v7x-class: 64 MiB per TensorCore, 2 TCs.  Leave headroom for Mosaic
        # internal scratch instead of requesting the entire VMEM.
        return 48 << 20, 4 << 20, True
    # v5e / v6e: 128 MiB physical, 1 TC -> allow bigger tiles and budget.
    return 96 << 20, 8 << 20, False


def _pick_tc(C, B, multi_core, usable, attn_itemsize):
    """Row-block size for phase 1 (tc | C, tc % 8 == 0, or tc == C)."""
    if C % 8 != 0:
        return C
    # Split when the (tc, C) accumulator + attn blocks would eat too much VMEM,
    # or to give megacore a second 'parallel' axis at B == 1 on v7x.
    need_split = C * C * (4 + 2 * attn_itemsize) > usable // 3
    want_split = multi_core and B == 1 and C > 128
    if not (need_split or want_split):
        return C
    for tc in (512, 256, 128, 64, 32, 16, 8):
        if tc < C and C % tc == 0:
            return tc
    return C


def _pick_tn(N, col_bytes, tile_target, usable, fixed_bytes, stream_factor):
    """Spatial tile width: multiple of 128, ~tile_target bytes of streamed data
    per step, bounded so the whole phase stays inside `usable` VMEM."""
    col_bytes = max(1, col_bytes)
    by_target = tile_target // col_bytes
    by_vmem = max(0, usable - fixed_bytes) // (stream_factor * col_bytes)
    tn = int(min(by_target, by_vmem, 8192)) // 128 * 128
    tn = max(128, tn)
    return N if N <= tn else tn


def _pick_fused_tn(N, C, itemsize, tile_target):
    """Output tile width for the fused path; must divide N (or equal N)."""
    if N % 128 != 0:
        return N
    desired = max(128, (tile_target // max(1, C * itemsize)) // 128 * 128)
    tn = min(desired, N)
    while N % tn != 0:
        tn -= 128
    return tn


# --------------------------------------------------------------------------
# Fused single-pass kernel (x resident in VMEM, output streamed)
# --------------------------------------------------------------------------
def _cam_fused_kernel(gamma_ref, x_ref, o_ref, attn_sc, *,
                      tn, matmul_dtype, approx_recip):
    j = pl.program_id(1)

    @pl.when(j == 0)
    def _build_attention():
        xm = x_ref[0].astype(matmul_dtype)                    # (C, N)
        # energy = x @ x^T, contracting the spatial axis on both operands.
        energy = lax.dot_general(
            xm, xm, dimension_numbers=(((1,), (1,)), ((), ())),
            preferred_element_type=jnp.float32)               # (C, C) f32
        # softmax(rowmax(E) - E) == exp(rowmin(E) - E) / sum (shift invariant)
        e_min = jnp.min(energy, axis=-1, keepdims=True)
        p = jnp.exp(e_min - energy)
        denom = jnp.sum(p, axis=-1, keepdims=True)
        attn_sc[...] = (gamma_ref[0] * p *
                        pl.reciprocal(denom, approx=approx_recip)
                        ).astype(attn_sc.dtype)               # gamma folded in

    start = pl.multiple_of(j * tn, 128) if tn % 128 == 0 else j * tn
    x_t = x_ref[0, :, pl.ds(start, tn)]                       # (C, tn)
    out = jnp.dot(attn_sc[...], x_t.astype(matmul_dtype),
                  preferred_element_type=jnp.float32)
    o_ref[0] = (out + x_t.astype(jnp.float32)).astype(o_ref.dtype)


# --------------------------------------------------------------------------
# Two-phase kernels (large C*N)
# --------------------------------------------------------------------------
def _energy_attention_kernel(gamma_ref, *refs, n_total, tn, split_c,
                             matmul_dtype, approx_recip):
    """Phase 1: accumulate channel energy over spatial tiles, emit gamma*softmax."""
    if split_c:
        lhs_ref, rhs_ref, attn_ref, acc_ref = refs
    else:
        lhs_ref, attn_ref, acc_ref = refs
        rhs_ref = lhs_ref

    kt = pl.program_id(2)
    n_spatial = pl.num_programs(2)

    @pl.when(kt == 0)
    def _init():
        acc_ref[...] = jnp.zeros_like(acc_ref)

    def _accumulate(mask_cols):
        lhs = lhs_ref[0]                                      # (tc, tn)
        rhs = rhs_ref[0] if split_c else lhs                  # (C,  tn)
        if mask_cols:
            col = kt * tn + lax.broadcasted_iota(jnp.int32, (1, tn), 1)
            valid = col < n_total
            lhs = jnp.where(valid, lhs, 0.0)
            rhs = lhs if not split_c else jnp.where(valid, rhs, 0.0)
        lhs_m = lhs.astype(matmul_dtype)
        rhs_m = lhs_m if not split_c else rhs.astype(matmul_dtype)
        acc_ref[...] += lax.dot_general(
            lhs_m, rhs_m, dimension_numbers=(((1,), (1,)), ((), ())),
            preferred_element_type=jnp.float32)

    if n_total % tn == 0:
        _accumulate(False)
    else:
        # Ragged N: run the masking VPU work only on the last spatial tile.
        @pl.when(kt < n_spatial - 1)
        def _full_tiles():
            _accumulate(False)

        @pl.when(kt == n_spatial - 1)
        def _partial_tile():
            _accumulate(True)

    @pl.when(kt == n_spatial - 1)
    def _finalize():
        energy = acc_ref[...]                                 # (tc, C) f32
        e_min = jnp.min(energy, axis=-1, keepdims=True)
        p = jnp.exp(e_min - energy)
        denom = jnp.sum(p, axis=-1, keepdims=True)
        attn_ref[0] = (gamma_ref[0] * p *
                       pl.reciprocal(denom, approx=approx_recip)
                       ).astype(attn_ref.dtype)               # stored in matmul_dtype


def _attend_residual_kernel(attn_ref, x_ref, o_ref, *, matmul_dtype):
    """Phase 2: out_tile = attn @ x_tile + x_tile (attn already gamma-scaled)."""
    x = x_ref[0]                                              # (C, tn)
    out = jnp.dot(attn_ref[0], x.astype(matmul_dtype),
                  preferred_element_type=jnp.float32)
    o_ref[0] = (out + x.astype(jnp.float32)).astype(o_ref.dtype)


# --------------------------------------------------------------------------
# Wrappers
# --------------------------------------------------------------------------
def _run_fused(x_flat, gamma, *, matmul_dtype, approx_recip, usable, tn_f):
    B, C, N = x_flat.shape
    itemsize = jnp.dtype(x_flat.dtype).itemsize
    n_tiles = N // tn_f if N % tn_f == 0 else 1

    return pl.pallas_call(
        functools.partial(_cam_fused_kernel, tn=tn_f,
                          matmul_dtype=matmul_dtype, approx_recip=approx_recip),
        out_shape=jax.ShapeDtypeStruct((B, C, N), x_flat.dtype),
        grid_spec=pltpu.PrefetchScalarGridSpec(
            num_scalar_prefetch=0,
            grid=(B, n_tiles),
            in_specs=[
                pl.BlockSpec(memory_space=pltpu.MemorySpace.SMEM),     # gamma
                pl.BlockSpec((1, C, N), lambda b, j: (b, 0, 0)),       # x resident
            ],
            out_specs=pl.BlockSpec((1, C, tn_f), lambda b, j: (b, 0, j)),
            scratch_shapes=[pltpu.VMEM((C, C), matmul_dtype)]),
        compiler_params=pltpu.CompilerParams(
            dimension_semantics=("parallel", "arbitrary"),
            vmem_limit_bytes=usable),
        cost_estimate=pl.CostEstimate(
            flops=int(4 * B * C * C * N + 2 * B * C * N),
            transcendentals=int(B * C * C),
            bytes_accessed=int(2 * B * C * N * itemsize)),
    )(gamma, x_flat)


def _run_two_phase(x_flat, gamma, *, matmul_dtype, approx_recip, usable,
                   tile_target, multi_core, tile_n_override):
    B, C, N = x_flat.shape
    itemsize = jnp.dtype(x_flat.dtype).itemsize
    attn_itemsize = jnp.dtype(matmul_dtype).itemsize

    # ---- phase 1: (B, C, C) gamma-scaled channel attention map -----------
    tc = _pick_tc(C, B, multi_core, usable, attn_itemsize)
    split_c = tc != C
    n_ctiles = C // tc

    col1 = (tc + (C if split_c else 0)) * itemsize
    fixed1 = tc * C * 4 + 2 * tc * C * attn_itemsize + (2 << 20)
    tn1 = (min(tile_n_override, N) if tile_n_override is not None
           else _pick_tn(N, col1, tile_target, usable, fixed1, 3))
    kt_tiles = pl.cdiv(N, tn1)

    in_specs = [pl.BlockSpec(memory_space=pltpu.MemorySpace.SMEM),     # gamma
                pl.BlockSpec((1, tc, tn1), lambda b, i, k: (b, i, k))]  # lhs rows
    operands = [gamma, x_flat]
    if split_c:
        in_specs.append(pl.BlockSpec((1, C, tn1), lambda b, i, k: (b, 0, k)))
        operands.append(x_flat)

    attn = pl.pallas_call(
        functools.partial(_energy_attention_kernel, n_total=N, tn=tn1,
                          split_c=split_c, matmul_dtype=matmul_dtype,
                          approx_recip=approx_recip),
        out_shape=jax.ShapeDtypeStruct((B, C, C), matmul_dtype),
        grid_spec=pltpu.PrefetchScalarGridSpec(
            num_scalar_prefetch=0,
            grid=(B, n_ctiles, kt_tiles),
            in_specs=in_specs,
            out_specs=pl.BlockSpec((1, tc, C), lambda b, i, k: (b, i, 0)),
            scratch_shapes=[pltpu.VMEM((tc, C), jnp.float32)]),
        compiler_params=pltpu.CompilerParams(
            dimension_semantics=("parallel", "parallel", "arbitrary"),
            vmem_limit_bytes=usable),
        cost_estimate=pl.CostEstimate(
            flops=int(2 * B * C * C * N),
            transcendentals=int(B * C * C),
            bytes_accessed=int(B * (C * N * itemsize *
                                    (1 + (n_ctiles if split_c else 0))
                                    + C * C * attn_itemsize))),
    )(*operands)

    # ---- phase 2: attn @ x + x, one (C, tn) tile per step -----------------
    col2 = C * itemsize
    fixed2 = 2 * C * C * attn_itemsize + (2 << 20)
    tn2 = (min(tile_n_override, N) if tile_n_override is not None
           else _pick_tn(N, col2, tile_target, usable, fixed2, 6))
    j_tiles = pl.cdiv(N, tn2)

    out_flat = pl.pallas_call(
        functools.partial(_attend_residual_kernel, matmul_dtype=matmul_dtype),
        out_shape=jax.ShapeDtypeStruct((B, C, N), x_flat.dtype),
        grid_spec=pltpu.PrefetchScalarGridSpec(
            num_scalar_prefetch=0,
            grid=(B, j_tiles),
            in_specs=[
                pl.BlockSpec((1, C, C), lambda b, j: (b, 0, 0)),   # attn (resident)
                pl.BlockSpec((1, C, tn2), lambda b, j: (b, 0, j)),  # x tile
            ],
            out_specs=pl.BlockSpec((1, C, tn2), lambda b, j: (b, 0, j))),
        compiler_params=pltpu.CompilerParams(
            dimension_semantics=("parallel", "parallel"),
            vmem_limit_bytes=usable),
        cost_estimate=pl.CostEstimate(
            flops=int(2 * B * C * C * N + 2 * B * C * N),
            transcendentals=0,
            bytes_accessed=int(B * (2 * C * N * itemsize + C * C * attn_itemsize))),
    )(attn, x_flat)
    return out_flat


def cam_module_forward(x, gamma, *, matmul_dtype=jnp.bfloat16,
                       force_two_phase=False, tile_n_override=None):
    """x: (B, C, H, W), gamma: (1,) f32 -> (B, C, H, W). CAM_Module.forward.

    tile_n_override (tests only, two-phase path): spatial tile width; must be
    a multiple of 128 or >= H*W.
    """
    B, C, H, W = x.shape
    N = H * W
    x_flat = x.reshape(B, C, N)
    gamma = jnp.asarray(gamma, dtype=jnp.float32).reshape(1)

    itemsize = jnp.dtype(x.dtype).itemsize
    mm_itemsize = jnp.dtype(matmul_dtype).itemsize
    approx_recip = bool(jnp.dtype(matmul_dtype) != jnp.dtype(jnp.float32))

    usable, tile_target, multi_core = _vmem_caps()

    if not force_two_phase:
        tn_f = _pick_fused_tn(N, C, itemsize, tile_target)
        x_bytes = C * N * itemsize
        cast_full = (0 if jnp.dtype(x.dtype) == jnp.dtype(matmul_dtype)
                     else C * N * mm_itemsize)
        fused_need = (2 * x_bytes                      # resident x, dbl-buffered
                      + cast_full                      # full-x cast for energy dot
                      + 2 * C * tn_f * itemsize        # dbl-buffered out tiles
                      + C * tn_f * (mm_itemsize + 4)   # cast slice + f32 out temp
                      + 3 * C * C * 4                  # energy / p / softmax temps
                      + 2 * C * C * mm_itemsize        # attn scratch + slack
                      + (2 << 20))
        if fused_need <= usable:
            out_flat = _run_fused(x_flat, gamma, matmul_dtype=matmul_dtype,
                                  approx_recip=approx_recip, usable=usable,
                                  tn_f=tn_f)
            return out_flat.reshape(B, C, H, W)

    out_flat = _run_two_phase(x_flat, gamma, matmul_dtype=matmul_dtype,
                              approx_recip=approx_recip, usable=usable,
                              tile_target=tile_target, multi_core=multi_core,
                              tile_n_override=tile_n_override)
    return out_flat.reshape(B, C, H, W)


def cam_module_reference(x, gamma, *, matmul_dtype=jnp.float32):
    """Plain-JAX mirror of CAM_Module.forward; matmul operands cast to
    matmul_dtype (f32 accumulation) to match the kernel's MXU precision."""
    B, C, H, W = x.shape
    q = x.reshape(B, C, -1)
    qm = q.astype(matmul_dtype)
    energy = jnp.einsum('bcn,bdn->bcd', qm, qm,
                        preferred_element_type=jnp.float32)
    energy_new = jnp.max(energy, axis=-1, keepdims=True) - energy
    attn = jax.nn.softmax(energy_new, axis=-1)
    out = jnp.einsum('bcd,bdn->bcn', attn.astype(matmul_dtype), qm,
                     preferred_element_type=jnp.float32)
    return (gamma[0] * out + q).reshape(B, C, H, W)


if __name__ == "__main__":
    key = jax.random.PRNGKey(0)
    B, C, H, W = 2, 4, 16, 16
    x = jax.random.normal(key, (B, C, H, W), dtype=jnp.float32)

    # gamma is zero-initialized in PyTorch; use a nonzero value so the
    # attention path is actually exercised.
    gamma = jnp.array([0.5], dtype=jnp.float32)

    # Performance path (fused kernel, bf16 MXU operands, f32 accumulation).
    out = jax.block_until_ready(cam_module_forward(x, gamma))
    ref_bf16 = cam_module_reference(x, gamma, matmul_dtype=jnp.bfloat16)
    assert out.shape == (B, C, H, W)
    assert jnp.allclose(out, ref_bf16, atol=1e-2, rtol=1e-2), "bf16 path mismatch"

    # Validation-faithful path (f32 matmuls, exact reciprocal).
    out_f32 = jax.block_until_ready(
        cam_module_forward(x, gamma, matmul_dtype=jnp.float32))
    ref_f32 = cam_module_reference(x, gamma, matmul_dtype=jnp.float32)
    assert jnp.allclose(out_f32, ref_f32, atol=1e-3, rtol=1e-3), "f32 path mismatch"

    # Exercise the two-phase tiled path, including a ragged spatial dim
    # (N = 324, tn = 128 -> masked last tile in phase 1, partial store in
    # phase 2), at a small shape.
    x2 = jax.random.normal(jax.random.PRNGKey(1), (1, 8, 18, 18),
                           dtype=jnp.float32)
    out2 = jax.block_until_ready(
        cam_module_forward(x2, gamma, matmul_dtype=jnp.float32,
                           force_two_phase=True, tile_n_override=128))
    ref2 = cam_module_reference(x2, gamma, matmul_dtype=jnp.float32)
    assert out2.shape == x2.shape
    assert jnp.allclose(out2, ref2, atol=5e-3, rtol=5e-3), "two-phase path mismatch"

    print("KERNEL_OK")
</pallas_src>

<mosaic_0001>
module attributes {stable_mosaic.version = 11 : i64} {
  func.func @_cam_fused_kernel(%arg0: i32, %arg1: i32, %arg2: memref<1xf32, #tpu.memory_space<smem>>, %arg3: memref<1x4x256xf32, #tpu.memory_space<vmem>>, %arg4: memref<1x4x256xf32, #tpu.memory_space<vmem>>, %arg5: memref<4x4xbf16, #tpu.memory_space<vmem>>) attributes {dimension_semantics = [#tpu.dimension_semantics<parallel>, #tpu.dimension_semantics<arbitrary>], iteration_bounds = array<i64: 2, 1>, scalar_prefetch = 0 : i64, scratch_operands = 1 : i64, tpu.core_type = #tpu.core_type<tc>, window_params = [{transform_indices = @transform_0, window_bounds = array<i64: 1>}, {transform_indices = @transform_1, window_bounds = array<i64: 1, 4, 256>}, {transform_indices = @transform_2, window_bounds = array<i64: 1, 4, 256>}]} {
    %c0_i32 = arith.constant 0 : i32
    %0 = arith.cmpi eq, %arg1, %c0_i32 : i32
    %1 = arith.extui %0 : i1 to i32
    %c0_i32_0 = arith.constant 0 : i32
    %2 = arith.cmpi ne, %1, %c0_i32_0 : i32
    scf.if %2 {
      %c0_7 = arith.constant 0 : index
      %c0_8 = arith.constant 0 : index
      %c0_9 = arith.constant 0 : index
      %15 = vector.load %arg3[%c0_7, %c0_8, %c0_9] : memref<1x4x256xf32, #tpu.memory_space<vmem>>, vector<1x4x256xf32>
      %16 = vector.shape_cast %15 : vector<1x4x256xf32> to vector<4x256xf32>
      %17 = arith.truncf %16 : vector<4x256xf32> to vector<4x256xbf16>
      %cst_10 = arith.constant dense<0.000000e+00> : vector<4x4xf32>
      %18 = tpu.matmul %17, %17, %cst_10 {dimension_numbers = #tpu.dot_dimension_numbers<[1], [1], [0], [0], [0, 0, 1, 0], [], []>} : vector<4x256xbf16>, vector<4x256xbf16>, vector<4x4xf32> -> vector<4x4xf32>
      %cst_11 = arith.constant dense<0x7F800000> : vector<4xf32>
      %19 = vector.multi_reduction <minimumf>, %18, %cst_11 [1] : vector<4x4xf32> to vector<4xf32>
      %20 = vector.shape_cast %19 : vector<4xf32> to vector<4x1xf32>
      %21 = vector.broadcast %20 : vector<4x1xf32> to vector<4x4xf32>
      %22 = arith.subf %21, %18 : vector<4x4xf32>
      %23 = math.exp %22 : vector<4x4xf32>
      %cst_12 = arith.constant dense<0.000000e+00> : vector<4xf32>
      %24 = vector.multi_reduction <add>, %23, %cst_12 [1] : vector<4x4xf32> to vector<4xf32>
      %25 = vector.shape_cast %24 : vector<4xf32> to vector<4x1xf32>
      %c0_13 = arith.constant 0 : index
      %26 = memref.load %arg2[%c0_13] : memref<1xf32, #tpu.memory_space<smem>>
      %27 = vector.broadcast %26 : f32 to vector<4x4xf32>
      %28 = arith.mulf %27, %23 : vector<4x4xf32>
      %29 = tpu.reciprocal %25 {approx = true} : vector<4x1xf32> -> vector<4x1xf32>
      %30 = vector.broadcast %29 : vector<4x1xf32> to vector<4x4xf32>
      %31 = arith.mulf %28, %30 : vector<4x4xf32>
      %32 = arith.truncf %31 : vector<4x4xf32> to vector<4x4xbf16>
      %c0_14 = arith.constant 0 : index
      %c0_15 = arith.constant 0 : index
      %33 = vector.load %arg5[%c0_14, %c0_15] : memref<4x4xbf16, #tpu.memory_space<vmem>>, vector<4x4xbf16>
      tpu.vector_store %arg5[%c0_14, %c0_15], %32 {strides = array<i32>} : memref<4x4xbf16, #tpu.memory_space<vmem>>, vector<4x4xbf16>,
    } else {
    }
    %c256_i32 = arith.constant 256 : i32
    %3 = arith.muli %arg1, %c256_i32 : i32
    %4 = tpu.assume_multiple %3, 128 : i32
    %c0 = arith.constant 0 : index
    %c0_1 = arith.constant 0 : index
    %5 = arith.index_cast %4 : i32 to index
    %6 = vector.load %arg3[%c0, %c0_1, %5] : memref<1x4x256xf32, #tpu.memory_space<vmem>>, vector<1x4x256xf32>
    %7 = vector.shape_cast %6 : vector<1x4x256xf32> to vector<4x256xf32>
    %c0_2 = arith.constant 0 : index
    %c0_3 = arith.constant 0 : index
    %8 = vector.load %arg5[%c0_2, %c0_3] : memref<4x4xbf16, #tpu.memory_space<vmem>>, vector<4x4xbf16>
    %9 = arith.truncf %7 : vector<4x256xf32> to vector<4x256xbf16>
    %cst = arith.constant dense<0.000000e+00> : vector<4x256xf32>
    %10 = tpu.matmul %8, %9, %cst {dimension_numbers = #tpu.dot_dimension_numbers<[1], [0], [0], [1], [0, 0, 1, 1], [], []>} : vector<4x4xbf16>, vector<4x256xbf16>, vector<4x256xf32> -> vector<4x256xf32>
    %11 = arith.addf %10, %7 : vector<4x256xf32>
    %c0_4 = arith.constant 0 : index
    %c0_5 = arith.constant 0 : index
    %c0_6 = arith.constant 0 : index
    %12 = vector.load %arg4[%c0_4, %c0_5, %c0_6] : memref<1x4x256xf32, #tpu.memory_space<vmem>>, vector<1x4x256xf32>
    %13 = vector.shape_cast %12 : vector<1x4x256xf32> to vector<4x256xf32>
    %14 = vector.shape_cast %11 : vector<4x256xf32> to vector<1x4x256xf32>
    tpu.vector_store %arg4[%c0_4, %c0_5, %c0_6], %14 {strides = array<i32>} : memref<1x4x256xf32, #tpu.memory_space<vmem>>, vector<1x4x256xf32>,
    return
  }
  func.func @transform_0(%arg0: i32, %arg1: i32) -> i32 {
    %c0_i32 = arith.constant 0 : i32
    %c0_i32_0 = arith.constant 0 : i32
    return %c0_i32 : i32
  }
  func.func @transform_1(%arg0: i32, %arg1: i32) -> (i32, i32, i32) {
    %c0_i32 = arith.constant 0 : i32
    %c0_i32_0 = arith.constant 0 : i32
    %c0_i32_1 = arith.constant 0 : i32
    return %arg0, %c0_i32, %c0_i32_0 : i32, i32, i32
  }
  func.func @transform_2(%arg0: i32, %arg1: i32) -> (i32, i32, i32) {
    %c0_i32 = arith.constant 0 : i32
    %c0_i32_0 = arith.constant 0 : i32
    return %arg0, %c0_i32, %arg1 : i32, i32, i32
  }
}

</mosaic_0001>

<llo_original>
// kernel: tpu_custom_call.1
$region0: #{tpu_custom_call.1}
  #allocation0 [shape = 'u32[]', space=smem, size = 0x4, offset = 0x4, fixed_abs, tag = 'smem constant byte address 0x4 - core index']
  #allocation1 [shape = 'u32[144,128]{1,0:T(1,128)}', space=vmem, size = 0x12000, scoped, tag = 'internal scratch']
  #allocation2 [shape = 'bf16[4,4]{1,0:T(4,128)(2,1)}', space=vmem, size = 0x400, scoped, tag = 'scratch operand']
  #allocation3 [shape = 'f32[1]{0:T(128)S(6)}', space=smem, size = 0x200, scoped, tag = 'scoped memory for tpu_custom_call.1']
  %s0 = inlined_call_operand.<no memory space> [shape: f32[1], index: 0, kind: input, shape index: {}]
  %s1 = inlined_call_operand.hbm [shape: f32[2,4,256], index: 1, kind: input, shape index: {}]
  %s2 = inlined_call_operand.hbm [shape: f32[2,4,256], index: 2, kind: output, shape index: {}]
  %s3 = sld [smem:[#allocation0]]
  $region49: #{tpu_custom_call.1} parent=0
    _
  %s5 = ssub.s32 1, %s3
  %s6 = scalar_select 0, %s5, %s3
  %7 = sst [smem:[#allocation3]] %s0
  $region1: #{tpu_custom_call.1} parent=0
    #allocation4 [shape = 'u8[8192]{0}', space=vmem, size = 0x2000, scoped, tag = 'input window, operand 1']
    #allocation5 [shape = 's32[2]{0}', space=sflag, size = 0x8, scoped, tag = 'scoped memory for tpu_custom_call.1']
    #allocation6 [shape = 's32[2]{0}', space=sflag, size = 0x8, scoped, tag = 'scoped memory for tpu_custom_call.1']
    #allocation7 [shape = 'u8[8192]{0}', space=vmem, size = 0x2000, scoped, tag = 'output window, operand 0']
    %8 = vsyncpa [#allocation5], 0
    %s9 = scalar_lea.sflag [#allocation5], 1
    %10 = vsyncpa %s9, 0
    %11 = vsyncpa [#allocation6], 0
    %s12 = scalar_lea.sflag [#allocation6], 1
    %13 = vsyncpa %s12, 0
    loop: start=0, step=1, limit=4
    $region2: #{tpu_custom_call.1} parent=1 // loop_pre_header
      _
    $region3: #{tpu_custom_call.1} parent=1 // loop_header
      %s15 = sphi 0, %s19
      %p16 = scmp.ge.s32.totalorder %s15, 4
      %s22 = sphi 0, %s34
      %s23 = sphi 0, %s30
      %s24 = sphi 0, %s22
      %s25 = sphi 0, %s23
      %s26 = sphi 0, %s24
      %s27 = sphi 0, %s25
      %s35 = sphi 0, %s35
      %s37 = sphi 0, %s35
      %s38 = sphi 0, %s37
      %s52 = sphi 0, %s38
      %s58 = sphi 0, %s60
      %s61 = sphi 0, %s58
      %s62 = sphi 0, %s61
      %s78 = sphi 0, %s62
      %s86 = sphi 0, %s88
      %s89 = sphi 0, %s86
      %s90 = sphi 0, %s89
      %s106 = sphi 0, %s90
    $region4: #{tpu_custom_call.1} parent=1 // loop_header_branch
      %18 = sbr.rel (%p16) target = $region8
    $region5: #{tpu_custom_call.1} parent=1 // loop_body
      %s20 = ssub.s32 %s15, 1
      %s21 = ssub.s32 %s15, 2
      %s28 = sadd.s32 1, %s23
      %p29 = scmp.ge.s32.totalorder %s28, 1
      %s30 = scalar_select %p29, 0, %s28
      %s31 = sadd.s32 1, %s22
      %s32 = scalar_select %p29, %s31, %s22
      %p33 = scmp.ge.s32.totalorder %s32, 2
      %s34 = scalar_select %p33, 0, %s32
      %s36 = sadd.s32 %s35, 1
      %p39 = scmp.eq.s32.totalorder %s15, 1
      %p40 = scmp.ne.s32.totalorder %s35, %s37
      %p41 = scmp.eq.s32.totalorder %s15, 0
      %p42 = por %p40, %p41
      %p43 = scmp.ne.s32.totalorder %s35, %s37
      %p44 = scmp.eq.s32.totalorder %s20, 1
      %p45 = por %p43, %p44
      %p46 = scmp.ne.s32.totalorder %s37, %s38
      %p47 = scmp.eq.s32.totalorder %s20, 0
      %p48 = por %p46, %p47
      %p49 = scmp.ne.s32.totalorder %s37, %s38
      %p50 = scmp.eq.s32.totalorder %s21, 1
      %p51 = por %p49, %p50
      %p53 = scmp.ne.s32.totalorder %s38, %s52
      %p54 = scmp.eq.s32.totalorder %s21, 0
      %p55 = por %p53, %p54
      %s56 = ssub.s32 %s22, %s34
      %p57 = scmp.eq.s32.totalorder %s56, 0
      %s59 = sadd.s32 %s58, 1
      %s60 = scalar_select %p57, %s58, %s59
      %p63 = pneg %p57
      %p64 = scmp.eq.s32.totalorder %s15, 1
      %p65 = por %p63, %p64
      %p66 = scmp.ne.s32.totalorder %s58, %s61
      %p67 = scmp.eq.s32.totalorder %s15, 0
      %p68 = por %p66, %p67
      %p69 = scmp.ne.s32.totalorder %s58, %s61
      %p70 = scmp.eq.s32.totalorder %s20, 1
      %p71 = por %p69, %p70
      %p72 = scmp.ne.s32.totalorder %s61, %s62
      %p73 = scmp.eq.s32.totalorder %s20, 0
      %p74 = por %p72, %p73
      %p75 = scmp.ne.s32.totalorder %s61, %s62
      %p76 = scmp.eq.s32.totalorder %s21, 1
      %p77 = por %p75, %p76
      %p79 = scmp.ne.s32.totalorder %s62, %s78
      %p80 = scmp.eq.s32.totalorder %s21, 0
      %p81 = por %p79, %p80
      %s82 = ssub.s32 %s22, %s34
      %s83 = ssub.s32 %s23, %s30
      %s84 = sor.u32 %s82, %s83
      %p85 = scmp.eq.s32.totalorder %s84, 0
      %s87 = sadd.s32 %s86, 1
      %s88 = scalar_select %p85, %s86, %s87
      %p91 = pneg %p85
      %p92 = scmp.eq.s32.totalorder %s15, 1
      %p93 = por %p91, %p92
      %p94 = scmp.ne.s32.totalorder %s86, %s89
      %p95 = scmp.eq.s32.totalorder %s15, 0
      %p96 = por %p94, %p95
      %p97 = scmp.ne.s32.totalorder %s86, %s89
      %p98 = scmp.eq.s32.totalorder %s20, 1
      %p99 = por %p97, %p98
      %p100 = scmp.ne.s32.totalorder %s89, %s90
      %p101 = scmp.eq.s32.totalorder %s20, 0
      %p102 = por %p100, %p101
      %p103 = scmp.ne.s32.totalorder %s89, %s90
      %p104 = scmp.eq.s32.totalorder %s21, 1
      %p105 = por %p103, %p104
      %p107 = scmp.ne.s32.totalorder %s90, %s106
      %p108 = scmp.eq.s32.totalorder %s21, 0
      %p109 = por %p107, %p108
      %p110 = scmp.le.s32.totalorder 1, %s15
      %p111 = scmp.lt.s32.totalorder %s15, 3
      %p112 = pnand %p110, %p111
      %p113 = pneg %p112
      // Predicated region
      $region9: #{tpu_custom_call.1} parent=5 // pred_check
        _
      $region10: #{tpu_custom_call.1} parent=5 // pred_check_branch
        %115 = sbr.rel (%p112) target = $region12
      $region11: #{tpu_custom_call.1} parent=5 // pred_region
        %s116 = ssub.s32 %s15, 1
        // Predicated region
        $region13: #{tpu_custom_call.1} parent=11 // pred_check
          %p117 = pneg %p48
        $region14: #{tpu_custom_call.1} parent=11 // pred_check_branch
          %119 = sbr.rel (%p117) target = $region16
        $region15: #{tpu_custom_call.1} parent=11 // pred_region
          _
        $region16: #{tpu_custom_call.1} parent=11 // pred_fallthru
          _
      $region12: #{tpu_custom_call.1} parent=5 // pred_fallthru
        _
      %p120 = scmp.lt.s32.totalorder %s15, 2
      // Predicated region
      $region17: #{tpu_custom_call.1} parent=5 // pred_check
        %p121 = pneg %p120
      $region18: #{tpu_custom_call.1} parent=5 // pred_check_branch
        %123 = sbr.rel (%p121) target = $region20
      $region19: #{tpu_custom_call.1} parent=5 // pred_region
        // Predicated region
        $region21: #{tpu_custom_call.1} parent=19 // pred_check
          %p124 = pneg %p68
        $region22: #{tpu_custom_call.1} parent=19 // pred_check_branch
          %126 = sbr.rel (%p124) target = $region24
        $region23: #{tpu_custom_call.1} parent=19 // pred_region
          %s127 = sand.u32 %s58, 1
          %s128 = scalar_lea.sflag [#allocation5], %s127
          %s129 = sand.u32 %s58, 1
          %s130 = smul.addr %s129, 8
          %s131 = scalar_lea.vmem [#allocation4], %s130
          %s133 = ssub.s32 128, 128
          %134 = vsyncadd %s128, %s133
          %s135 = smul.addr %s22, 2
          %s136 = smul.addr %s135, 64
          %s137 = scalar_lea.hbm %s1, %s136
          %s139 = sshll.u32 %s131, 4
          %s140 = int_to_ptr.vmem [resolvable:$true] %s139
          %142 = dma.hbm_to_vmem [thread:$0]  %s137, 128, %s140, %s128
        $region24: #{tpu_custom_call.1} parent=19 // pred_fallthru
          _
      $region20: #{tpu_custom_call.1} parent=5 // pred_fallthru
        _
      %p143 = scmp.le.s32.totalorder 1, %s15
      %p144 = scmp.lt.s32.totalorder %s15, 3
      %p145 = pnand %p143, %p144
      %p146 = pneg %p145
      // Predicated region
      $region25: #{tpu_custom_call.1} parent=5 // pred_check
        _
      $region26: #{tpu_custom_call.1} parent=5 // pred_check_branch
        %148 = sbr.rel (%p145) target = $region28
      $region27: #{tpu_custom_call.1} parent=5 // pred_region
        %s149 = ssub.s32 %s15, 1
        %s150 = sand.u32 %s61, 1
        %s151 = scalar_lea.sflag [#allocation5], %s150
        %s152 = sand.u32 %s61, 1
        %s153 = smul.addr %s152, 8
        %s154 = scalar_lea.vmem [#allocation4], %s153
        // Predicated region
        $region29: #{tpu_custom_call.1} parent=27 // pred_check
          %p155 = pneg %p74
        $region30: #{tpu_custom_call.1} parent=27 // pred_check_branch
          %157 = sbr.rel (%p155) target = $region32
        $region31: #{tpu_custom_call.1} parent=27 // pred_region
          %158 = dma.done %s151, 128
        $region32: #{tpu_custom_call.1} parent=27 // pred_fallthru
          _
        %p159 = pneg %p48
        %p160 = pneg %p45
        %s161 = sand.u32 %s61, 1
        %s162 = scalar_lea.sflag [#allocation5], %s161
        %s163 = sand.u32 %s61, 1
        %s164 = smul.addr %s163, 8
        %s165 = scalar_lea.vmem [#allocation4], %s164
        %p166 = pneg %p74
        %p167 = pneg %p71
        %p168 = pneg %p102
        %p169 = pneg %p99
        %s170 = sand.u32 %s89, 1
        %s171 = scalar_lea.sflag [#allocation6], %s170
        %s172 = sand.u32 %s89, 1
        %s173 = smul.addr %s172, 8
        %s174 = scalar_lea.vmem [#allocation7], %s173
        %s175 = smul.u32 2, %s25
        %p177 = scmp.eq.s32.totalorder %s25, 0
        // Predicated region
        $region33: #{tpu_custom_call.1} parent=27 // pred_check
          %p178 = pneg %p177
        $region34: #{tpu_custom_call.1} parent=27 // pred_check_branch
          %180 = sbr.rel (%p178) target = $region36
        $region35: #{tpu_custom_call.1} parent=27 // pred_region
          %v181 = vld [vmem:[%s154] sm:$0xff]
          %v183 = vcombine.high %v181, %v181
          %v185 = vpack.c.bf16 %v181, %v181
          %v186 = vpack.c.bf16 %v183, %v183
          %187 = vmatprep.subr.bf16.mxu0 %v186
          %188 = vmatpush1.bf16.xpose.msra.mxu0 %v185
          %189 = vmatprep.subr.bf16.mxu0 0
          %190 = vmatpush1.bf16.xpose.msra.mxu0 0
          %191 = vmatprep.subr.bf16.mxu0 0
          %192 = vmatpush1.bf16.xpose.msra.mxu0 0
          %193 = vmatprep.subr.bf16.mxu0 0
          %194 = vmatpush1.bf16.xpose.msra.mxu0 0
          %195 = vmatprep.subr.bf16.mxu0 0
          %196 = vmatpush1.bf16.xpose.msra.mxu0 0
          %197 = vmatprep.subr.bf16.mxu0 0
          %198 = vmatpush1.bf16.xpose.msra.mxu0 0
          %199 = vmatprep.subr.bf16.mxu0 0
          %200 = vmatpush1.bf16.xpose.msra.mxu0 0
          %201 = vmatprep.subr.bf16.mxu0 0
          %202 = vmatpush1.bf16.xpose.msra.mxu0 0
          %203 = vmatprep.subr.bf16.mxu0 0
          %204 = vmatpush1.bf16.xpose.msra.mxu0 0
          %205 = vmatprep.subr.bf16.mxu0 0
          %206 = vmatpush1.bf16.xpose.msra.mxu0 0
          %207 = vmatprep.subr.bf16.mxu0 0
          %208 = vmatpush1.bf16.xpose.msra.mxu0 0
          %209 = vmatprep.subr.bf16.mxu0 0
          %210 = vmatpush1.bf16.xpose.msra.mxu0 0
          %211 = vmatprep.subr.bf16.mxu0 0
          %212 = vmatpush1.bf16.xpose.msra.mxu0 0
          %213 = vmatprep.subr.bf16.mxu0 0
          %214 = vmatpush1.bf16.xpose.msra.mxu0 0
          %215 = vmatprep.subr.bf16.mxu0 0
          %216 = vmatpush1.bf16.xpose.msra.mxu0 0
          %217 = vmatprep.subr.bf16.mxu0 0
          %218 = vmatpush1.bf16.xpose.msra.mxu0 0
          %219 = vmatprep.mubr.bf16.mxu0 %v186
          %220 = vmatmul.mubr.bf16.gmra.mrb[0].mxu0 %v185
          %v221 = vpop.f32.mrb[0].mxu0
          %v222 = vadd.f32 0.0, %v221
          %v223 = vpop.f32.mrb[0].mxu0
          %v224 = vpop.f32.mrb[0].mxu0
          %v225 = vpop.f32.mrb[0].mxu0
          %226 = vdwg.mxu0
          %vm227 = vcmask 27648
          %v228 = vsel %vm227, %v222, inf
          %229 = vmin.xlane.f32.xlu0 %v228
          %v230 = vpop.xlane.xlu0 %229
          %v231 = vsub.f32 %v230, %v222
          %v232 = vmul.f32 %v231, 1.442695
          %v233 = vpow.pop %v232
          %v234 = vsel %vm227, %v233, 0.0
          %235 = vadd.xlane.f32.xlu0 %v234
          %v236 = vpop.xlane.xlu0 %235
          %s237 = sld [smem:[#allocation3]]
          %v238 = vstv %s237
          %v239 = vmul.f32 %v238, %v233
          %v240 = vrcp.pop %v236
          %v241 = vmul.f32 %v239, %v240
          %v242 = vpack.c.bf16 %v241, %v241
          %vm243 = vcmask 25600
          %244 = vst.msk [vmem:[#allocation2] sm:$0x3] %vm243, %v242
        $region36: #{tpu_custom_call.1} parent=27 // pred_fallthru
          _
        %s245 = smul.u32 %s25, 256
        %s246 = sshra.s32 %s245, 7
        %s247 = sand.u32 %s245, 127
        %s248 = smul.addr %s246, 4
        %s249 = scalar_lea.vmem %s154, %s248 [#allocation4]
        %v250 = vld [vmem:[%s249] sm:$0xff]
        %v251 = vld [vmem:[#allocation2] sm:$0x3]
        %v253 = vcombine.high %v250, %v250
        %v255 = vpack.c.bf16 %v250, %v250
        %v256 = vpack.c.bf16 %v253, %v253
        %vm257 = vcmask 31744
        %v259 = vsel %vm257, %v251, 0
        %vm261 = vcmask 1041408
        %v263 = vsel %vm261, %v255, 0
        %v266 = vsel %vm261, %v256, 0
        %268 = vmatprep.subr.bf16.mxu0 %v266
        %269 = vmatpush1.bf16.msra.mxu0 %v263
        %270 = vmatprep.subr.bf16.mxu0 0
        %271 = vmatpush1.bf16.msra.mxu0 0
        %272 = vmatprep.subr.bf16.mxu0 0
        %273 = vmatpush1.bf16.msra.mxu0 0
        %274 = vmatprep.subr.bf16.mxu0 0
        %275 = vmatpush1.bf16.msra.mxu0 0
        %276 = vmatprep.subr.bf16.mxu0 0
        %277 = vmatpush1.bf16.msra.mxu0 0
        %278 = vmatprep.subr.bf16.mxu0 0
        %279 = vmatpush1.bf16.msra.mxu0 0
        %280 = vmatprep.subr.bf16.mxu0 0
        %281 = vmatpush1.bf16.msra.mxu0 0
        %282 = vmatprep.subr.bf16.mxu0 0
        %283 = vmatpush1.bf16.msra.mxu0 0
        %284 = vmatprep.subr.bf16.mxu0 0
        %285 = vmatpush1.bf16.msra.mxu0 0
        %286 = vmatprep.subr.bf16.mxu0 0
        %287 = vmatpush1.bf16.msra.mxu0 0
        %288 = vmatprep.subr.bf16.mxu0 0
        %289 = vmatpush1.bf16.msra.mxu0 0
        %290 = vmatprep.subr.bf16.mxu0 0
        %291 = vmatpush1.bf16.msra.mxu0 0
        %292 = vmatprep.subr.bf16.mxu0 0
        %293 = vmatpush1.bf16.msra.mxu0 0
        %294 = vmatprep.subr.bf16.mxu0 0
        %295 = vmatpush1.bf16.msra.mxu0 0
        %296 = vmatprep.subr.bf16.mxu0 0
        %297 = vmatpush1.bf16.msra.mxu0 0
        %298 = vmatprep.subr.bf16.mxu0 0
        %299 = vmatpush1.bf16.msra.mxu0 0
        %300 = vmatprep.mubr.bf16.mxu0 0
        %301 = vmatmul.mubr.bf16.gmra.mrb[0].mxu0 %v259
        %v302 = vpop.f32.mrb[0].mxu0
        %v303 = vadd.f32 %v250, %v302
        %v304 = vpop.f32.mrb[0].mxu0
        %v305 = vadd.f32 %v253, %v304
        %v306 = vpop.f32.mrb[0].mxu0
        %v307 = vpop.f32.mrb[0].mxu0
        %308 = vdwg.mxu0
        %v311 = vcombine.low %v303, %v305
        %313 = vst [vmem:[%s174] sm:$0xff] %v311
        %s314 = sand.u32 %s89, 1
        %s315 = scalar_lea.sflag [#allocation6], %s314
        %s316 = sand.u32 %s89, 1
        %s317 = smul.addr %s316, 8
        %s318 = scalar_lea.vmem [#allocation7], %s317
        // Predicated region
        $region37: #{tpu_custom_call.1} parent=27 // pred_check
          %p319 = pneg %p99
        $region38: #{tpu_custom_call.1} parent=27 // pred_check_branch
          %321 = sbr.rel (%p319) target = $region40
        $region39: #{tpu_custom_call.1} parent=27 // pred_region
          %s322 = smul.u32 2, %s25
          %s324 = ssub.s32 128, 128
          %325 = vsyncadd %s315, %s324
          %s326 = smul.addr %s24, 2
          %s327 = sadd.s32 %s322, %s326
          %s328 = smul.addr %s327, 64
          %s329 = scalar_lea.hbm %s2, %s328
          %s331 = sshll.u32 %s318, 4
          %s332 = int_to_ptr.vmem [resolvable:$true] %s331
          %334 = dma.vmem_to_hbm [thread:$0]  %s332, 128, %s329, %s315
        $region40: #{tpu_custom_call.1} parent=27 // pred_fallthru
          _
      $region28: #{tpu_custom_call.1} parent=5 // pred_fallthru
        _
      %p335 = scmp.le.s32.totalorder 2, %s15
      // Predicated region
      $region41: #{tpu_custom_call.1} parent=5 // pred_check
        %p336 = pneg %p335
      $region42: #{tpu_custom_call.1} parent=5 // pred_check_branch
        %338 = sbr.rel (%p336) target = $region44
      $region43: #{tpu_custom_call.1} parent=5 // pred_region
        %s339 = ssub.s32 %s15, 2
        // Predicated region
        $region45: #{tpu_custom_call.1} parent=43 // pred_check
          %p340 = pneg %p105
        $region46: #{tpu_custom_call.1} parent=43 // pred_check_branch
          %342 = sbr.rel (%p340) target = $region48
        $region47: #{tpu_custom_call.1} parent=43 // pred_region
          %s343 = sand.u32 %s90, 1
          %s344 = scalar_lea.sflag [#allocation6], %s343
          %s345 = sand.u32 %s90, 1
          %s346 = smul.addr %s345, 8
          %s347 = scalar_lea.vmem [#allocation7], %s346
          %348 = dma.done %s344, 128
        $region48: #{tpu_custom_call.1} parent=43 // pred_fallthru
          _
      $region44: #{tpu_custom_call.1} parent=5 // pred_fallthru
        _
    $region6: #{tpu_custom_call.1} parent=1 // loop_footer
      %s19 = sadd.s32 1, %s15
    $region7: #{tpu_custom_call.1} parent=1 // loop_footer_branch
      %14 = sbr.rel target = $region3
    $region8: #{tpu_custom_call.1} parent=1 // loop_exit
      _
    %349 = vsyncpa [#allocation5], 1
    %s350 = scalar_lea.sflag [#allocation5], 1
    %351 = vsyncpa %s350, 1
    %352 = vsyncpa [#allocation6], 1
    %s353 = scalar_lea.sflag [#allocation6], 1
    %354 = vsyncpa %s353, 1

</llo_original>
